<compile_context>
chip_gen: v7x
topology: tpu7x:2x2x1
jax: 0.10.0
libtpu: 0.0.40
codegen_flags: <defaults>
</compile_context>

<pallas_src>
import functools

import numpy as np

import jax
import jax.numpy as jnp
from jax.experimental import pallas as pl
from jax.experimental.pallas import tpu as pltpu


def _round_up(x, m):
    return (x + m - 1) // m * m


def _vmem_capacity_bytes():
    """Physical per-core VMEM; conservative fallback if the query fails."""
    try:
        return int(pltpu.get_tpu_info().vmem_capacity_bytes)
    except Exception:
        return 64 * 2**20  # v7x per-TensorCore VMEM (smallest of v5e/v6e/v7x)


def _mlp_kernel(x_ref, w_in_ref, b_in_ref, w_h_ref, b_h_ref, w_out_ref,
                b_out_ref, o_ref, h_ref, *, w_h_resident):
    """One (batch_tile, layer) grid step of the fused MLP.

    Grid axis 0: batch tiles ("parallel", megacore-shardable).
    Grid axis 1: hidden layers ("arbitrary"); h_ref carries the activation.
    """
    l = pl.program_id(1)

    # Layer-step 0: input projection + ReLU into the persistent h scratch.
    @pl.when(l == 0)
    def _():
        h0 = jnp.dot(x_ref[...], w_in_ref[...],
                     preferred_element_type=jnp.float32)
        h_ref[...] = jnp.maximum(h0 + b_in_ref[...], 0.0).astype(h_ref.dtype)

    # Hidden layer l: h = relu(h @ W_l + b_l).
    # Resident mode: all L weight blocks live in VMEM, index dynamically.
    # Streamed mode: exactly one (Hp, Hp) block is resident; the next layer's
    # block streams in behind this matmul.
    w_l = w_h_ref[l] if w_h_resident else w_h_ref[0]
    h = jnp.dot(h_ref[...], w_l, preferred_element_type=jnp.float32)
    h_ref[...] = jnp.maximum(h + b_h_ref[l], 0.0).astype(h_ref.dtype)

    # Last layer-step: output projection as a VPU multiply + lane reduction
    # (w_out stored (1, H)), plus the SMEM scalar bias.
    @pl.when(l == pl.num_programs(1) - 1)
    def _():
        hw = h_ref[...].astype(jnp.float32) * w_out_ref[...].astype(jnp.float32)
        out = jnp.sum(hw, axis=-1, keepdims=True) + b_out_ref[0, 0]
        o_ref[...] = out.astype(o_ref.dtype)


def pack_params(params, *, compute_dtype=jnp.bfloat16):
    """One-time padding + dtype cast of the weights (do NOT call per forward).

    params: w_in (F, H), b_in (1, H), w_h (L, H, H), b_h (L, 1, H),
            w_out (H, 1), b_out (1, 1)   (already transposed to y = x @ W + b).
    Returns (packed_arrays_dict, meta_dict).
    """
    F, H = params["w_in"].shape
    L = params["w_h"].shape[0]
    if L < 1:
        raise ValueError("num_layers must be >= 1")
    Fp = _round_up(F, 128)
    Hp = _round_up(H, 128)

    def pad_to(a, shape):
        return jnp.pad(a, [(0, s - d) for s, d in zip(shape, a.shape)])

    packed = {
        "w_in":  pad_to(params["w_in"], (Fp, Hp)).astype(compute_dtype),
        "b_in":  pad_to(params["b_in"].reshape(1, H), (1, Hp)).astype(jnp.float32),
        "w_h":   pad_to(params["w_h"], (L, Hp, Hp)).astype(compute_dtype),
        "b_h":   pad_to(params["b_h"].reshape(L, 1, H), (L, 1, Hp)).astype(jnp.float32),
        # w_out stored (1, H) so the output layer is a VPU multiply + lane reduce.
        "w_out": pad_to(params["w_out"].reshape(1, H), (1, Hp)).astype(compute_dtype),
        "b_out": params["b_out"].reshape(1, 1).astype(jnp.float32),
    }
    meta = dict(F=F, H=H, L=L, Fp=Fp, Hp=Hp, compute_dtype=compute_dtype)
    return packed, meta


def flexible_nn_forward(x, packed, meta, *, batch_tile=None,
                        weights_resident=None):
    """Forward pass of FlexibleNN.  x: (B, input_size) float32."""
    B, F = x.shape
    if F != meta["F"]:
        raise ValueError(f"input_size mismatch: {F} vs {meta['F']}")
    Fp, Hp, L = meta["Fp"], meta["Hp"], meta["L"]
    cdt = meta["compute_dtype"]
    itemsize = np.dtype(cdt).itemsize
    sub = 8 if itemsize >= 4 else 16          # sublane multiple for batch tile

    # --- VMEM budget (respects v7x's 64 MiB per-core VMEM). ---------------
    cap = _vmem_capacity_bytes()
    budget = int(cap * 0.80)                  # planning budget
    hard = int(cap * 0.85)                    # never request more than this

    def footprint(bt, resident):
        wh = (L if resident else 1) * Hp * Hp * itemsize          # hidden weights
        fixed = (Fp * Hp * itemsize                                # w_in
                 + 8 * Hp * 4                                      # b_in (f32)
                 + L * 8 * Hp * 4                                  # b_h (f32)
                 + 8 * Hp * itemsize                               # w_out
                 + wh)
        per_tile = (bt * Fp * itemsize                             # x tile
                    + bt * 128 * 4)                                # out tile (lane pad)
        # Conservative: every pipelined block double-buffered, plus h scratch.
        return 2 * (fixed + per_tile) + bt * Hp * itemsize

    # --- Batch-tile selection. ---------------------------------------------
    if batch_tile is None:
        bt_cap = 2048 if itemsize < 4 else 1024     # keep MXU above weight DMA
        bt = min(bt_cap, _round_up(B, sub))
        # >= 2 batch tiles so the "parallel" axis can span both v7x TensorCores.
        if B > sub and bt >= B:
            bt = _round_up((B + 1) // 2, sub)
    else:
        bt = _round_up(max(1, batch_tile), sub)

    def fit_bt(bt0, resident):
        bt_ = bt0
        while footprint(bt_, resident) > budget and bt_ > sub:
            bt_ = max(sub, _round_up(bt_ // 2, sub))
        return bt_

    # --- Weight residency: prefer fully-resident w_h when it fits. ----------
    if weights_resident is None:
        bt_res = fit_bt(bt, True)
        if footprint(bt_res, True) <= budget and bt_res >= min(bt, 256):
            resident, bt = True, bt_res
        else:
            resident = False
            bt = fit_bt(bt, False)
    else:
        resident = bool(weights_resident)
        bt = fit_bt(bt, resident)

    est = footprint(bt, resident)
    vmem_limit = int(min(hard, max(min(32 << 20, hard), est + (8 << 20))))

    Bp = _round_up(B, bt)
    x_p = jnp.pad(x, ((0, Bp - B), (0, Fp - F))).astype(cdt)
    grid = (Bp // bt, L)

    if resident:
        w_h_spec = pl.BlockSpec((L, Hp, Hp), lambda i, l: (0, 0, 0))
    else:
        w_h_spec = pl.BlockSpec((1, Hp, Hp), lambda i, l: (l, 0, 0))

    out_p = pl.pallas_call(
        functools.partial(_mlp_kernel, w_h_resident=resident),
        out_shape=jax.ShapeDtypeStruct((Bp, 1), jnp.float32),
        grid_spec=pltpu.PrefetchScalarGridSpec(
            num_scalar_prefetch=0,
            grid=grid,
            in_specs=[
                pl.BlockSpec((bt, Fp),   lambda i, l: (i, 0)),       # x
                pl.BlockSpec((Fp, Hp),   lambda i, l: (0, 0)),       # w_in
                pl.BlockSpec((1, Hp),    lambda i, l: (0, 0)),       # b_in
                w_h_spec,                                            # w_h
                pl.BlockSpec((L, 1, Hp), lambda i, l: (0, 0, 0)),    # b_h (resident)
                pl.BlockSpec((1, Hp),    lambda i, l: (0, 0)),       # w_out
                pl.BlockSpec(memory_space=pltpu.MemorySpace.SMEM),   # b_out scalar
            ],
            out_specs=pl.BlockSpec((bt, 1), lambda i, l: (i, 0)),
            scratch_shapes=[pltpu.VMEM((bt, Hp), cdt)],              # running h
        ),
        compiler_params=pltpu.CompilerParams(
            dimension_semantics=("parallel", "arbitrary"),
            vmem_limit_bytes=vmem_limit),
    )(x_p, packed["w_in"], packed["b_in"], packed["w_h"], packed["b_h"],
      packed["w_out"], packed["b_out"])

    return out_p[:B]


def init_params(key, input_size, hidden_size, num_layers):
    """Deterministic synthetic init. Weights already transposed to [in, out]."""
    ks = jax.random.split(key, 6)
    scale_in = 1.0 / jnp.sqrt(input_size)
    scale_h = 1.0 / jnp.sqrt(hidden_size)
    return {
        "w_in": jax.random.uniform(ks[0], (input_size, hidden_size),
                                   jnp.float32, -scale_in, scale_in),
        "b_in": jax.random.uniform(ks[1], (1, hidden_size),
                                   jnp.float32, -scale_in, scale_in),
        "w_h": jax.random.uniform(ks[2], (num_layers, hidden_size, hidden_size),
                                  jnp.float32, -scale_h, scale_h),
        "b_h": jax.random.uniform(ks[3], (num_layers, 1, hidden_size),
                                  jnp.float32, -scale_h, scale_h),
        "w_out": jax.random.uniform(ks[4], (hidden_size, 1),
                                    jnp.float32, -scale_h, scale_h),
        "b_out": jax.random.uniform(ks[5], (1, 1),
                                    jnp.float32, -scale_h, scale_h),
    }


def reference_forward(x, params):
    h = jnp.maximum(x @ params["w_in"] + params["b_in"], 0.0)
    for l in range(params["w_h"].shape[0]):
        h = jnp.maximum(h @ params["w_h"][l] + params["b_h"][l], 0.0)
    return h @ params["w_out"] + params["b_out"]


if __name__ == "__main__":
    # Small shapes consistent with FlexibleNN(input_size, hidden_size, num_layers).
    batch, input_size, hidden_size, num_layers = 32, 16, 32, 3

    key = jax.random.PRNGKey(0)
    k_x, k_p = jax.random.split(key)
    x = jax.random.normal(k_x, (batch, input_size), jnp.float32)
    params = init_params(k_p, input_size, hidden_size, num_layers)

    ref = reference_forward(x, params)

    # f32, default plan (resident weights, >=2 batch tiles) -> tight tolerance.
    packed32, meta32 = pack_params(params, compute_dtype=jnp.float32)
    out32 = jax.block_until_ready(flexible_nn_forward(x, packed32, meta32))
    assert out32.shape == (batch, 1), out32.shape
    assert jnp.allclose(out32, ref, atol=1e-4, rtol=1e-4), "mismatch (f32 resident)"

    # f32, forced layer-streamed weights + explicit small batch tile.
    out32_s = jax.block_until_ready(
        flexible_nn_forward(x, packed32, meta32, batch_tile=16,
                            weights_resident=False))
    assert jnp.allclose(out32_s, ref, atol=1e-4, rtol=1e-4), "mismatch (f32 streamed)"

    # bf16 default path (MXU-native weights/activations, f32 accumulation);
    # only bf16 rounding of the inter-layer activation causes drift vs f32 ref.
    packed16, meta16 = pack_params(params)          # compute_dtype=bfloat16
    out16 = jax.block_until_ready(flexible_nn_forward(x, packed16, meta16))
    assert out16.shape == (batch, 1), out16.shape
    assert jnp.allclose(out16, ref, atol=5e-2, rtol=5e-2), "mismatch (bf16)"

    print("KERNEL_OK")
</pallas_src>

<mosaic_0001>
module attributes {stable_mosaic.version = 11 : i64} {
  func.func @_mlp_kernel(%arg0: i32, %arg1: i32, %arg2: memref<16x128xf32, #tpu.memory_space<vmem>>, %arg3: memref<128x128xf32, #tpu.memory_space<vmem>>, %arg4: memref<1x128xf32, #tpu.memory_space<vmem>>, %arg5: memref<3x128x128xf32, #tpu.memory_space<vmem>>, %arg6: memref<3x1x128xf32, #tpu.memory_space<vmem>>, %arg7: memref<1x128xf32, #tpu.memory_space<vmem>>, %arg8: memref<1x1xf32, #tpu.memory_space<smem>>, %arg9: memref<16x1xf32, #tpu.memory_space<vmem>>, %arg10: memref<16x128xf32, #tpu.memory_space<vmem>>) attributes {dimension_semantics = [#tpu.dimension_semantics<parallel>, #tpu.dimension_semantics<arbitrary>], iteration_bounds = array<i64: 2, 3>, scalar_prefetch = 0 : i64, scratch_operands = 1 : i64, tpu.core_type = #tpu.core_type<tc>, window_params = [{transform_indices = @transform_0, window_bounds = array<i64: 16, 128>}, {pipeline_mode = #tpu.pipeline_mode<synchronous>, transform_indices = @transform_1, window_bounds = array<i64: 128, 128>}, {pipeline_mode = #tpu.pipeline_mode<synchronous>, transform_indices = @transform_2, window_bounds = array<i64: 1, 128>}, {pipeline_mode = #tpu.pipeline_mode<synchronous>, transform_indices = @transform_3, window_bounds = array<i64: 3, 128, 128>}, {pipeline_mode = #tpu.pipeline_mode<synchronous>, transform_indices = @transform_4, window_bounds = array<i64: 3, 1, 128>}, {pipeline_mode = #tpu.pipeline_mode<synchronous>, transform_indices = @transform_5, window_bounds = array<i64: 1, 128>}, {transform_indices = @transform_6, window_bounds = array<i64: 1, 1>}, {transform_indices = @transform_7, window_bounds = array<i64: 16, 1>}]} {
    %c0_i32 = arith.constant 0 : i32
    %0 = arith.cmpi eq, %arg1, %c0_i32 : i32
    %1 = arith.extui %0 : i1 to i32
    %c0_i32_0 = arith.constant 0 : i32
    %2 = arith.cmpi ne, %1, %c0_i32_0 : i32
    scf.if %2 {
      %c0_10 = arith.constant 0 : index
      %c0_11 = arith.constant 0 : index
      %19 = vector.load %arg2[%c0_10, %c0_11] : memref<16x128xf32, #tpu.memory_space<vmem>>, vector<16x128xf32>
      %c0_12 = arith.constant 0 : index
      %c0_13 = arith.constant 0 : index
      %20 = vector.load %arg3[%c0_12, %c0_13] : memref<128x128xf32, #tpu.memory_space<vmem>>, vector<128x128xf32>
      %cst_14 = arith.constant dense<0.000000e+00> : vector<16x128xf32>
      %21 = tpu.matmul %19, %20, %cst_14 {dimension_numbers = #tpu.dot_dimension_numbers<[1], [0], [0], [1], [0, 0, 1, 1], [], []>} : vector<16x128xf32>, vector<128x128xf32>, vector<16x128xf32> -> vector<16x128xf32>
      %c0_15 = arith.constant 0 : index
      %c0_16 = arith.constant 0 : index
      %22 = vector.load %arg4[%c0_15, %c0_16] : memref<1x128xf32, #tpu.memory_space<vmem>>, vector<1x128xf32>
      %23 = vector.broadcast %22 : vector<1x128xf32> to vector<16x128xf32>
      %24 = arith.addf %21, %23 : vector<16x128xf32>
      %cst_17 = arith.constant 0.000000e+00 : f32
      %25 = vector.broadcast %cst_17 : f32 to vector<16x128xf32>
      %26 = arith.maximumf %24, %25 : vector<16x128xf32>
      %c0_18 = arith.constant 0 : index
      %c0_19 = arith.constant 0 : index
      %27 = vector.load %arg10[%c0_18, %c0_19] : memref<16x128xf32, #tpu.memory_space<vmem>>, vector<16x128xf32>
      tpu.vector_store %arg10[%c0_18, %c0_19], %26 {strides = array<i32>} : memref<16x128xf32, #tpu.memory_space<vmem>>, vector<16x128xf32>,
    } else {
    }
    %3 = arith.index_cast %arg1 : i32 to index
    %c0 = arith.constant 0 : index
    %c0_1 = arith.constant 0 : index
    %4 = vector.load %arg5[%3, %c0, %c0_1] : memref<3x128x128xf32, #tpu.memory_space<vmem>>, vector<1x128x128xf32>
    %5 = vector.shape_cast %4 : vector<1x128x128xf32> to vector<128x128xf32>
    %c0_2 = arith.constant 0 : index
    %c0_3 = arith.constant 0 : index
    %6 = vector.load %arg10[%c0_2, %c0_3] : memref<16x128xf32, #tpu.memory_space<vmem>>, vector<16x128xf32>
    %cst = arith.constant dense<0.000000e+00> : vector<16x128xf32>
    %7 = tpu.matmul %6, %5, %cst {dimension_numbers = #tpu.dot_dimension_numbers<[1], [0], [0], [1], [0, 0, 1, 1], [], []>} : vector<16x128xf32>, vector<128x128xf32>, vector<16x128xf32> -> vector<16x128xf32>
    %8 = arith.index_cast %arg1 : i32 to index
    %c0_4 = arith.constant 0 : index
    %c0_5 = arith.constant 0 : index
    %9 = vector.load %arg6[%8, %c0_4, %c0_5] : memref<3x1x128xf32, #tpu.memory_space<vmem>>, vector<1x1x128xf32>
    %10 = vector.shape_cast %9 : vector<1x1x128xf32> to vector<1x128xf32>
    %11 = vector.broadcast %10 : vector<1x128xf32> to vector<16x128xf32>
    %12 = arith.addf %7, %11 : vector<16x128xf32>
    %cst_6 = arith.constant 0.000000e+00 : f32
    %13 = vector.broadcast %cst_6 : f32 to vector<16x128xf32>
    %14 = arith.maximumf %12, %13 : vector<16x128xf32>
    %c0_7 = arith.constant 0 : index
    %c0_8 = arith.constant 0 : index
    %15 = vector.load %arg10[%c0_7, %c0_8] : memref<16x128xf32, #tpu.memory_space<vmem>>, vector<16x128xf32>
    tpu.vector_store %arg10[%c0_7, %c0_8], %14 {strides = array<i32>} : memref<16x128xf32, #tpu.memory_space<vmem>>, vector<16x128xf32>,
    %c2_i32 = arith.constant 2 : i32
    %16 = arith.cmpi eq, %arg1, %c2_i32 : i32
    %17 = arith.extui %16 : i1 to i32
    %c0_i32_9 = arith.constant 0 : i32
    %18 = arith.cmpi ne, %17, %c0_i32_9 : i32
    scf.if %18 {
      %c0_10 = arith.constant 0 : index
      %c0_11 = arith.constant 0 : index
      %19 = vector.load %arg10[%c0_10, %c0_11] : memref<16x128xf32, #tpu.memory_space<vmem>>, vector<16x128xf32>
      %c0_12 = arith.constant 0 : index
      %c0_13 = arith.constant 0 : index
      %20 = vector.load %arg7[%c0_12, %c0_13] : memref<1x128xf32, #tpu.memory_space<vmem>>, vector<1x128xf32>
      %21 = vector.broadcast %20 : vector<1x128xf32> to vector<16x128xf32>
      %22 = arith.mulf %19, %21 : vector<16x128xf32>
      %cst_14 = arith.constant dense<0.000000e+00> : vector<16xf32>
      %23 = vector.multi_reduction <add>, %22, %cst_14 [1] : vector<16x128xf32> to vector<16xf32>
      %24 = vector.shape_cast %23 : vector<16xf32> to vector<16x1xf32>
      %c0_15 = arith.constant 0 : index
      %c0_16 = arith.constant 0 : index
      %25 = memref.load %arg8[%c0_15, %c0_16] : memref<1x1xf32, #tpu.memory_space<smem>>
      %26 = vector.broadcast %25 : f32 to vector<16x1xf32>
      %27 = arith.addf %24, %26 : vector<16x1xf32>
      %c0_17 = arith.constant 0 : index
      %c0_18 = arith.constant 0 : index
      %28 = vector.load %arg9[%c0_17, %c0_18] : memref<16x1xf32, #tpu.memory_space<vmem>>, vector<16x1xf32>
      tpu.vector_store %arg9[%c0_17, %c0_18], %27 {strides = array<i32>} : memref<16x1xf32, #tpu.memory_space<vmem>>, vector<16x1xf32>,
    } else {
    }
    return
  }
  func.func @transform_0(%arg0: i32, %arg1: i32) -> (i32, i32) {
    %c0_i32 = arith.constant 0 : i32
    %c0_i32_0 = arith.constant 0 : i32
    return %arg0, %c0_i32 : i32, i32
  }
  func.func @transform_1(%arg0: i32, %arg1: i32) -> (i32, i32) {
    %c0_i32 = arith.constant 0 : i32
    %c0_i32_0 = arith.constant 0 : i32
    %c0_i32_1 = arith.constant 0 : i32
    return %c0_i32, %c0_i32_0 : i32, i32
  }
  func.func @transform_2(%arg0: i32, %arg1: i32) -> (i32, i32) {
    %c0_i32 = arith.constant 0 : i32
    %c0_i32_0 = arith.constant 0 : i32
    %c0_i32_1 = arith.constant 0 : i32
    return %c0_i32, %c0_i32_0 : i32, i32
  }
  func.func @transform_3(%arg0: i32, %arg1: i32) -> (i32, i32, i32) {
    %c0_i32 = arith.constant 0 : i32
    %c0_i32_0 = arith.constant 0 : i32
    %c0_i32_1 = arith.constant 0 : i32
    %c0_i32_2 = arith.constant 0 : i32
    return %c0_i32, %c0_i32_0, %c0_i32_1 : i32, i32, i32
  }
  func.func @transform_4(%arg0: i32, %arg1: i32) -> (i32, i32, i32) {
    %c0_i32 = arith.constant 0 : i32
    %c0_i32_0 = arith.constant 0 : i32
    %c0_i32_1 = arith.constant 0 : i32
    %c0_i32_2 = arith.constant 0 : i32
    return %c0_i32, %c0_i32_0, %c0_i32_1 : i32, i32, i32
  }
  func.func @transform_5(%arg0: i32, %arg1: i32) -> (i32, i32) {
    %c0_i32 = arith.constant 0 : i32
    %c0_i32_0 = arith.constant 0 : i32
    %c0_i32_1 = arith.constant 0 : i32
    return %c0_i32, %c0_i32_0 : i32, i32
  }
  func.func @transform_6(%arg0: i32, %arg1: i32) -> (i32, i32) {
    %c0_i32 = arith.constant 0 : i32
    %c0_i32_0 = arith.constant 0 : i32
    %c0_i32_1 = arith.constant 0 : i32
    return %c0_i32, %c0_i32_0 : i32, i32
  }
  func.func @transform_7(%arg0: i32, %arg1: i32) -> (i32, i32) {
    %c0_i32 = arith.constant 0 : i32
    %c0_i32_0 = arith.constant 0 : i32
    return %arg0, %c0_i32 : i32, i32
  }
}

</mosaic_0001>

<llo_original>
// kernel: tpu_custom_call.1
$region0: #{tpu_custom_call.1}
  #allocation0 [shape = 'u32[]', space=smem, size = 0x4, offset = 0x4, fixed_abs, tag = 'smem constant byte address 0x4 - core index']
  #allocation1 [shape = 'u32[144,128]{1,0:T(1,128)}', space=vmem, size = 0x12000, scoped, tag = 'internal scratch']
  #allocation2 [shape = 'f32[16,128]{1,0:T(8,128)}', space=vmem, size = 0x2000, scoped, tag = 'scratch operand']
  #allocation3 [shape = 'f32[1,1]{1,0:T(1,128)S(6)}', space=smem, size = 0x200, scoped, tag = 'scoped memory for tpu_custom_call.1']
  %s0 = inlined_call_operand.hbm [shape: f32[32,128], index: 0, kind: input, shape index: {}]
  %s1 = inlined_call_operand.hbm [shape: f32[128,128], index: 1, kind: input, shape index: {}]
  %s2 = inlined_call_operand.vmem [shape: f32[1,128], index: 2, kind: input, shape index: {}]
  %s3 = inlined_call_operand.hbm [shape: f32[3,128,128], index: 3, kind: input, shape index: {}]
  %s4 = inlined_call_operand.vmem [shape: f32[3,1,128], index: 4, kind: input, shape index: {}]
  %s5 = inlined_call_operand.vmem [shape: f32[1,128], index: 5, kind: input, shape index: {}]
  %s6 = inlined_call_operand.<no memory space> [shape: f32[1,1], index: 6, kind: input, shape index: {}]
  %s7 = inlined_call_operand.vmem [shape: f32[32,1], index: 7, kind: output, shape index: {}]
  %s8 = sld [smem:[#allocation0]]
  $region81: #{tpu_custom_call.1} parent=0
    _
  %s10 = ssub.s32 1, %s8
  %s11 = scalar_select 0, %s10, %s8
  %12 = sst [smem:[#allocation3]] %s6
  $region1: #{tpu_custom_call.1} parent=0
    #allocation4 [shape = 'u8[16384]{0}', space=vmem, size = 0x4000, scoped, tag = 'input window, operand 0']
    #allocation5 [shape = 's32[2]{0}', space=sflag, size = 0x8, scoped, tag = 'scoped memory for tpu_custom_call.1']
    #allocation6 [shape = 'u8[65536]{0}', space=vmem, size = 0x10000, scoped, tag = 'input window, operand 1, single buffered']
    #allocation7 [shape = 's32[1]{0}', space=sflag, size = 0x4, scoped, tag = 'scoped memory for tpu_custom_call.1']
    #allocation8 [shape = 'u8[196608]{0}', space=vmem, size = 0x30000, scoped, tag = 'input window, operand 3, single buffered']
    %13 = vsyncpa [#allocation5], 0
    %s14 = scalar_lea.sflag [#allocation5], 1
    %15 = vsyncpa %s14, 0
    %16 = vsyncpa [#allocation7], 0
    loop: start=0, step=1, limit=8
    $region2: #{tpu_custom_call.1} parent=1 // loop_pre_header
      _
    $region3: #{tpu_custom_call.1} parent=1 // loop_header
      %s18 = sphi 0, %s22
      %p19 = scmp.ge.s32.totalorder %s18, 8
      %s25 = sphi 0, %s37
      %s26 = sphi 0, %s33
      %s27 = sphi 0, %s25
      %s28 = sphi 0, %s26
      %s29 = sphi 0, %s27
      %s30 = sphi 0, %s28
      %s40 = sphi 0, %s42
      %s43 = sphi 0, %s40
      %s44 = sphi 0, %s43
      %s60 = sphi 0, %s44
      %s64 = sphi 0, %s64
      %s66 = sphi 0, %s64
      %s67 = sphi 0, %s66
      %s81 = sphi 0, %s67
      %s85 = sphi 0, %s85
      %s87 = sphi 0, %s85
      %s88 = sphi 0, %s87
      %s102 = sphi 0, %s88
      %s106 = sphi 0, %s106
      %s108 = sphi 0, %s106
      %s109 = sphi 0, %s108
      %s123 = sphi 0, %s109
      %s127 = sphi 0, %s127
      %s129 = sphi 0, %s127
      %s130 = sphi 0, %s129
      %s144 = sphi 0, %s130
      %s148 = sphi 0, %s148
      %s150 = sphi 0, %s148
      %s151 = sphi 0, %s150
      %s165 = sphi 0, %s151
      %s169 = sphi 0, %s169
      %s171 = sphi 0, %s169
      %s172 = sphi 0, %s171
      %s186 = sphi 0, %s172
      %s192 = sphi 0, %s194
      %s195 = sphi 0, %s192
      %s196 = sphi 0, %s195
      %s212 = sphi 0, %s196
    $region4: #{tpu_custom_call.1} parent=1 // loop_header_branch
      %21 = sbr.rel (%p19) target = $region8
    $region5: #{tpu_custom_call.1} parent=1 // loop_body
      %s23 = ssub.s32 %s18, 1
      %s24 = ssub.s32 %s18, 2
      %s31 = sadd.s32 1, %s26
      %p32 = scmp.ge.s32.totalorder %s31, 3
      %s33 = scalar_select %p32, 0, %s31
      %s34 = sadd.s32 1, %s25
      %s35 = scalar_select %p32, %s34, %s25
      %p36 = scmp.ge.s32.totalorder %s35, 2
      %s37 = scalar_select %p36, 0, %s35
      %s38 = ssub.s32 %s25, %s37
      %p39 = scmp.eq.s32.totalorder %s38, 0
      %s41 = sadd.s32 %s40, 1
      %s42 = scalar_select %p39, %s40, %s41
      %p45 = pneg %p39
      %p46 = scmp.eq.s32.totalorder %s18, 5
      %p47 = por %p45, %p46
      %p48 = scmp.ne.s32.totalorder %s40, %s43
      %p49 = scmp.eq.s32.totalorder %s18, 0
      %p50 = por %p48, %p49
      %p51 = scmp.ne.s32.totalorder %s40, %s43
      %p52 = scmp.eq.s32.totalorder %s23, 5
      %p53 = por %p51, %p52
      %p54 = scmp.ne.s32.totalorder %s43, %s44
      %p55 = scmp.eq.s32.totalorder %s23, 0
      %p56 = por %p54, %p55
      %p57 = scmp.ne.s32.totalorder %s43, %s44
      %p58 = scmp.eq.s32.totalorder %s24, 5
      %p59 = por %p57, %p58
      %p61 = scmp.ne.s32.totalorder %s44, %s60
      %p62 = scmp.eq.s32.totalorder %s24, 0
      %p63 = por %p61, %p62
      %s65 = sadd.s32 %s64, 1
      %p68 = scmp.eq.s32.totalorder %s18, 5
      %p69 = scmp.ne.s32.totalorder %s64, %s66
      %p70 = scmp.eq.s32.totalorder %s18, 0
      %p71 = por %p69, %p70
      %p72 = scmp.ne.s32.totalorder %s64, %s66
      %p73 = scmp.eq.s32.totalorder %s23, 5
      %p74 = por %p72, %p73
      %p75 = scmp.ne.s32.totalorder %s66, %s67
      %p76 = scmp.eq.s32.totalorder %s23, 0
      %p77 = por %p75, %p76
      %p78 = scmp.ne.s32.totalorder %s66, %s67
      %p79 = scmp.eq.s32.totalorder %s24, 5
      %p80 = por %p78, %p79
      %p82 = scmp.ne.s32.totalorder %s67, %s81
      %p83 = scmp.eq.s32.totalorder %s24, 0
      %p84 = por %p82, %p83
      %s86 = sadd.s32 %s85, 1
      %p89 = scmp.eq.s32.totalorder %s18, 5
      %p90 = scmp.ne.s32.totalorder %s85, %s87
      %p91 = scmp.eq.s32.totalorder %s18, 0
      %p92 = por %p90, %p91
      %p93 = scmp.ne.s32.totalorder %s85, %s87
      %p94 = scmp.eq.s32.totalorder %s23, 5
      %p95 = por %p93, %p94
      %p96 = scmp.ne.s32.totalorder %s87, %s88
      %p97 = scmp.eq.s32.totalorder %s23, 0
      %p98 = por %p96, %p97
      %p99 = scmp.ne.s32.totalorder %s87, %s88
      %p100 = scmp.eq.s32.totalorder %s24, 5
      %p101 = por %p99, %p100
      %p103 = scmp.ne.s32.totalorder %s88, %s102
      %p104 = scmp.eq.s32.totalorder %s24, 0
      %p105 = por %p103, %p104
      %s107 = sadd.s32 %s106, 1
      %p110 = scmp.eq.s32.totalorder %s18, 5
      %p111 = scmp.ne.s32.totalorder %s106, %s108
      %p112 = scmp.eq.s32.totalorder %s18, 0
      %p113 = por %p111, %p112
      %p114 = scmp.ne.s32.totalorder %s106, %s108
      %p115 = scmp.eq.s32.totalorder %s23, 5
      %p116 = por %p114, %p115
      %p117 = scmp.ne.s32.totalorder %s108, %s109
      %p118 = scmp.eq.s32.totalorder %s23, 0
      %p119 = por %p117, %p118
      %p120 = scmp.ne.s32.totalorder %s108, %s109
      %p121 = scmp.eq.s32.totalorder %s24, 5
      %p122 = por %p120, %p121
      %p124 = scmp.ne.s32.totalorder %s109, %s123
      %p125 = scmp.eq.s32.totalorder %s24, 0
      %p126 = por %p124, %p125
      %s128 = sadd.s32 %s127, 1
      %p131 = scmp.eq.s32.totalorder %s18, 5
      %p132 = scmp.ne.s32.totalorder %s127, %s129
      %p133 = scmp.eq.s32.totalorder %s18, 0
      %p134 = por %p132, %p133
      %p135 = scmp.ne.s32.totalorder %s127, %s129
      %p136 = scmp.eq.s32.totalorder %s23, 5
      %p137 = por %p135, %p136
      %p138 = scmp.ne.s32.totalorder %s129, %s130
      %p139 = scmp.eq.s32.totalorder %s23, 0
      %p140 = por %p138, %p139
      %p141 = scmp.ne.s32.totalorder %s129, %s130
      %p142 = scmp.eq.s32.totalorder %s24, 5
      %p143 = por %p141, %p142
      %p145 = scmp.ne.s32.totalorder %s130, %s144
      %p146 = scmp.eq.s32.totalorder %s24, 0
      %p147 = por %p145, %p146
      %s149 = sadd.s32 %s148, 1
      %p152 = scmp.eq.s32.totalorder %s18, 5
      %p153 = scmp.ne.s32.totalorder %s148, %s150
      %p154 = scmp.eq.s32.totalorder %s18, 0
      %p155 = por %p153, %p154
      %p156 = scmp.ne.s32.totalorder %s148, %s150
      %p157 = scmp.eq.s32.totalorder %s23, 5
      %p158 = por %p156, %p157
      %p159 = scmp.ne.s32.totalorder %s150, %s151
      %p160 = scmp.eq.s32.totalorder %s23, 0
      %p161 = por %p159, %p160
      %p162 = scmp.ne.s32.totalorder %s150, %s151
      %p163 = scmp.eq.s32.totalorder %s24, 5
      %p164 = por %p162, %p163
      %p166 = scmp.ne.s32.totalorder %s151, %s165
      %p167 = scmp.eq.s32.totalorder %s24, 0
      %p168 = por %p166, %p167
      %s170 = sadd.s32 %s169, 1
      %p173 = scmp.eq.s32.totalorder %s18, 5
      %p174 = scmp.ne.s32.totalorder %s169, %s171
      %p175 = scmp.eq.s32.totalorder %s18, 0
      %p176 = por %p174, %p175
      %p177 = scmp.ne.s32.totalorder %s169, %s171
      %p178 = scmp.eq.s32.totalorder %s23, 5
      %p179 = por %p177, %p178
      %p180 = scmp.ne.s32.totalorder %s171, %s172
      %p181 = scmp.eq.s32.totalorder %s23, 0
      %p182 = por %p180, %p181
      %p183 = scmp.ne.s32.totalorder %s171, %s172
      %p184 = scmp.eq.s32.totalorder %s24, 5
      %p185 = por %p183, %p184
      %p187 = scmp.ne.s32.totalorder %s172, %s186
      %p188 = scmp.eq.s32.totalorder %s24, 0
      %p189 = por %p187, %p188
      %s190 = ssub.s32 %s25, %s37
      %p191 = scmp.eq.s32.totalorder %s190, 0
      %s193 = sadd.s32 %s192, 1
      %s194 = scalar_select %p191, %s192, %s193
      %p197 = pneg %p191
      %p198 = scmp.eq.s32.totalorder %s18, 5
      %p199 = por %p197, %p198
      %p200 = scmp.ne.s32.totalorder %s192, %s195
      %p201 = scmp.eq.s32.totalorder %s18, 0
      %p202 = por %p200, %p201
      %p203 = scmp.ne.s32.totalorder %s192, %s195
      %p204 = scmp.eq.s32.totalorder %s23, 5
      %p205 = por %p203, %p204
      %p206 = scmp.ne.s32.totalorder %s195, %s196
      %p207 = scmp.eq.s32.totalorder %s23, 0
      %p208 = por %p206, %p207
      %p209 = scmp.ne.s32.totalorder %s195, %s196
      %p210 = scmp.eq.s32.totalorder %s24, 5
      %p211 = por %p209, %p210
      %p213 = scmp.ne.s32.totalorder %s196, %s212
      %p214 = scmp.eq.s32.totalorder %s24, 0
      %p215 = por %p213, %p214
      %p216 = scmp.le.s32.totalorder 1, %s18
      %p217 = scmp.lt.s32.totalorder %s18, 7
      %p218 = pnand %p216, %p217
      %p219 = pneg %p218
      // Predicated region
      $region9: #{tpu_custom_call.1} parent=5 // pred_check
        _
      $region10: #{tpu_custom_call.1} parent=5 // pred_check_branch
        %221 = sbr.rel (%p218) target = $region12
      $region11: #{tpu_custom_call.1} parent=5 // pred_region
        %s222 = ssub.s32 %s18, 1
        // Predicated region
        $region13: #{tpu_custom_call.1} parent=11 // pred_check
          %p223 = pneg %p77
        $region14: #{tpu_custom_call.1} parent=11 // pred_check_branch
          %225 = sbr.rel (%p223) target = $region16
        $region15: #{tpu_custom_call.1} parent=11 // pred_region
          %s227 = ssub.s32 2048, 2048
          %228 = vsyncadd [#allocation7], %s227
          %s229 = sshll.u32 [#allocation6], 4
          %s230 = int_to_ptr.vmem [resolvable:$true] %s229
          %235 = dma.hbm_to_vmem [thread:$0]  %s1, 2048, %s230, [#allocation7], 128, 128, 8
        $region16: #{tpu_custom_call.1} parent=11 // pred_fallthru
          _
        // Predicated region
        $region17: #{tpu_custom_call.1} parent=11 // pred_check
          %p236 = pneg %p98
        $region18: #{tpu_custom_call.1} parent=11 // pred_check_branch
          %238 = sbr.rel (%p236) target = $region20
        $region19: #{tpu_custom_call.1} parent=11 // pred_region
          _
        $region20: #{tpu_custom_call.1} parent=11 // pred_fallthru
          _
        // Predicated region
        $region21: #{tpu_custom_call.1} parent=11 // pred_check
          %p239 = pneg %p119
        $region22: #{tpu_custom_call.1} parent=11 // pred_check_branch
          %241 = sbr.rel (%p239) target = $region24
        $region23: #{tpu_custom_call.1} parent=11 // pred_region
          %s243 = ssub.s32 6144, 6144
          %244 = vsyncadd [#allocation7], %s243
          %s245 = sshll.u32 [#allocation8], 4
          %s246 = int_to_ptr.vmem [resolvable:$true] %s245
          %251 = dma.hbm_to_vmem [thread:$0]  %s3, 6144, %s246, [#allocation7], 128, 128, 8
        $region24: #{tpu_custom_call.1} parent=11 // pred_fallthru
          _
        // Predicated region
        $region25: #{tpu_custom_call.1} parent=11 // pred_check
          %p252 = pneg %p140
        $region26: #{tpu_custom_call.1} parent=11 // pred_check_branch
          %254 = sbr.rel (%p252) target = $region28
        $region27: #{tpu_custom_call.1} parent=11 // pred_region
          _
        $region28: #{tpu_custom_call.1} parent=11 // pred_fallthru
          _
        // Predicated region
        $region29: #{tpu_custom_call.1} parent=11 // pred_check
          %p255 = pneg %p161
        $region30: #{tpu_custom_call.1} parent=11 // pred_check_branch
          %257 = sbr.rel (%p255) target = $region32
        $region31: #{tpu_custom_call.1} parent=11 // pred_region
          _
        $region32: #{tpu_custom_call.1} parent=11 // pred_fallthru
          _
        // Predicated region
        $region33: #{tpu_custom_call.1} parent=11 // pred_check
          %p258 = pneg %p182
        $region34: #{tpu_custom_call.1} parent=11 // pred_check_branch
          %260 = sbr.rel (%p258) target = $region36
        $region35: #{tpu_custom_call.1} parent=11 // pred_region
          _
        $region36: #{tpu_custom_call.1} parent=11 // pred_fallthru
          _
      $region12: #{tpu_custom_call.1} parent=5 // pred_fallthru
        _
      %p261 = scmp.lt.s32.totalorder %s18, 6
      // Predicated region
      $region37: #{tpu_custom_call.1} parent=5 // pred_check
        %p262 = pneg %p261
      $region38: #{tpu_custom_call.1} parent=5 // pred_check_branch
        %264 = sbr.rel (%p262) target = $region40
      $region39: #{tpu_custom_call.1} parent=5 // pred_region
        // Predicated region
        $region41: #{tpu_custom_call.1} parent=39 // pred_check
          %p265 = pneg %p50
        $region42: #{tpu_custom_call.1} parent=39 // pred_check_branch
          %267 = sbr.rel (%p265) target = $region44
        $region43: #{tpu_custom_call.1} parent=39 // pred_region
          %s268 = sand.u32 %s40, 1
          %s269 = scalar_lea.sflag [#allocation5], %s268
          %s270 = sand.u32 %s40, 1
          %s271 = smul.addr %s270, 16
          %s272 = scalar_lea.vmem [#allocation4], %s271
          %s273 = smul.u32 2, %s25
          %s275 = ssub.s32 256, 256
          %276 = vsyncadd %s269, %s275
          %s277 = smul.addr %s273, 128
          %s278 = scalar_lea.hbm %s0, %s277
          %s279 = sshll.u32 %s272, 4
          %s280 = int_to_ptr.vmem [resolvable:$true] %s279
          %285 = dma.hbm_to_vmem [thread:$0]  %s278, 256, %s280, %s269, 128, 128, 8
        $region44: #{tpu_custom_call.1} parent=39 // pred_fallthru
          _
      $region40: #{tpu_custom_call.1} parent=5 // pred_fallthru
        _
      %p286 = scmp.le.s32.totalorder 1, %s18
      %p287 = scmp.lt.s32.totalorder %s18, 7
      %p288 = pnand %p286, %p287
      %p289 = pneg %p288
      // Predicated region
      $region45: #{tpu_custom_call.1} parent=5 // pred_check
        _
      $region46: #{tpu_custom_call.1} parent=5 // pred_check_branch
        %291 = sbr.rel (%p288) target = $region48
      $region47: #{tpu_custom_call.1} parent=5 // pred_region
        %s292 = ssub.s32 %s18, 1
        %s293 = sand.u32 %s43, 1
        %s294 = scalar_lea.sflag [#allocation5], %s293
        %s295 = sand.u32 %s43, 1
        %s296 = smul.addr %s295, 16
        %s297 = scalar_lea.vmem [#allocation4], %s296
        // Predicated region
        $region49: #{tpu_custom_call.1} parent=47 // pred_check
          %p298 = pneg %p56
        $region50: #{tpu_custom_call.1} parent=47 // pred_check_branch
          %300 = sbr.rel (%p298) target = $region52
        $region51: #{tpu_custom_call.1} parent=47 // pred_region
          %301 = dma.done %s294, 256
        $region52: #{tpu_custom_call.1} parent=47 // pred_fallthru
          _
        // Predicated region
        $region53: #{tpu_custom_call.1} parent=47 // pred_check
          %p302 = pneg %p77
        $region54: #{tpu_custom_call.1} parent=47 // pred_check_branch
          %304 = sbr.rel (%p302) target = $region56
        $region55: #{tpu_custom_call.1} parent=47 // pred_region
          %305 = dma.done [#allocation7], 2048
        $region56: #{tpu_custom_call.1} parent=47 // pred_fallthru
          _
        // Predicated region
        $region57: #{tpu_custom_call.1} parent=47 // pred_check
          %p306 = pneg %p119
        $region58: #{tpu_custom_call.1} parent=47 // pred_check_branch
          %308 = sbr.rel (%p306) target = $region60
        $region59: #{tpu_custom_call.1} parent=47 // pred_region
          %309 = dma.done [#allocation7], 6144
        $region60: #{tpu_custom_call.1} parent=47 // pred_fallthru
          _
        %s310 = sand.u32 %s43, 1
        %s311 = scalar_lea.sflag [#allocation5], %s310
        %s312 = sand.u32 %s43, 1
        %s313 = smul.addr %s312, 16
        %s314 = scalar_lea.vmem [#allocation4], %s313
        %p315 = pneg %p56
        %p316 = pneg %p53
        %p317 = pneg %p77
        %p318 = pneg %p74
        %p319 = pneg %p98
        %p320 = pneg %p95
        %p321 = pneg %p119
        %p322 = pneg %p116
        %p323 = pneg %p140
        %p324 = pneg %p137
        %p325 = pneg %p161
        %p326 = pneg %p158
        %p327 = pneg %p182
        %p328 = pneg %p179
        %p329 = pneg %p208
        %p330 = pneg %p205
        %s331 = smul.u32 2, %s27
        %p332 = scmp.lt.s32.totalorder %s331, 3
        %s333 = scalar_select %p332, %s331, 3
        %s334 = smul.addr %s333, 8
        %s335 = scalar_lea.vmem %s7, %s334
        %s336 = smul.u32 2, %s27
        %s337 = smul.u32 2, %s27
        %p338 = scmp.lt.s32.totalorder %s337, 3
        %s339 = scalar_select %p338, %s337, 3
        %s340 = smul.addr %s339, 8
        %s341 = scalar_lea.vmem %s7, %s340
        %s342 = smul.u32 2, %s27
        %p343 = scmp.eq.s32.totalorder %s28, 0
        // Predicated region
        $region61: #{tpu_custom_call.1} parent=47 // pred_check
          %p344 = pneg %p343
        $region62: #{tpu_custom_call.1} parent=47 // pred_check_branch
          %346 = sbr.rel (%p344) target = $region64
        $region63: #{tpu_custom_call.1} parent=47 // pred_region
          %v347 = vld [vmem:[%s297] sm:$0xff]
          %v348 = vld [vmem:[%s297 + $0x8] sm:$0xff]
          %v349 = vld [vmem:[#allocation6] sm:$0xff]
          %v350 = vld [vmem:[#allocation6 + $0x8] sm:$0xff]
          %v351 = vld [vmem:[#allocation6 + $0x10] sm:$0xff]
          %v352 = vld [vmem:[#allocation6 + $0x18] sm:$0xff]
          %v353 = vld [vmem:[#allocation6 + $0x20] sm:$0xff]
          %v354 = vld [vmem:[#allocation6 + $0x28] sm:$0xff]
          %v355 = vld [vmem:[#allocation6 + $0x30] sm:$0xff]
          %v356 = vld [vmem:[#allocation6 + $0x38] sm:$0xff]
          %v357 = vld [vmem:[#allocation6 + $0x40] sm:$0xff]
          %v358 = vld [vmem:[#allocation6 + $0x48] sm:$0xff]
          %v359 = vld [vmem:[#allocation6 + $0x50] sm:$0xff]
          %v360 = vld [vmem:[#allocation6 + $0x58] sm:$0xff]
          %v361 = vld [vmem:[#allocation6 + $0x60] sm:$0xff]
          %v362 = vld [vmem:[#allocation6 + $0x68] sm:$0xff]
          %v363 = vld [vmem:[#allocation6 + $0x70] sm:$0xff]
          %v364 = vld [vmem:[#allocation6 + $0x78] sm:$0xff]
          %v365 = vld [vmem:[%s2] sm:$0x1]
          %v367 = vlaneseq
          %v368 = vshrl.u32 %v367, 7
          %v369 = vsub.s32 0, %v368
          %v370 = vrot.slane %v365, %v369
          %372 = vmatprep.subr.mxu0 0.0
          %373 = vmatpush1.msra.mxu0 %v349
          %374 = vmatprep.subr.mxu0 0.0
          %375 = vmatpush1.msra.mxu0 %v350
          %376 = vmatprep.subr.mxu0 0.0
          %377 = vmatpush1.msra.mxu0 %v351
          %378 = vmatprep.subr.mxu0 0.0
          %379 = vmatpush1.msra.mxu0 %v352
          %380 = vmatprep.subr.mxu0 0.0
          %381 = vmatpush1.msra.mxu0 %v353
          %382 = vmatprep.subr.mxu0 0.0
          %383 = vmatpush1.msra.mxu0 %v354
          %384 = vmatprep.subr.mxu0 0.0
          %385 = vmatpush1.msra.mxu0 %v355
          %386 = vmatprep.subr.mxu0 0.0
          %387 = vmatpush1.msra.mxu0 %v356
          %388 = vmatprep.subr.mxu0 0.0
          %389 = vmatpush1.msra.mxu0 %v357
          %390 = vmatprep.subr.mxu0 0.0
          %391 = vmatpush1.msra.mxu0 %v358
          %392 = vmatprep.subr.mxu0 0.0
          %393 = vmatpush1.msra.mxu0 %v359
          %394 = vmatprep.subr.mxu0 0.0
          %395 = vmatpush1.msra.mxu0 %v360
          %396 = vmatprep.subr.mxu0 0.0
          %397 = vmatpush1.msra.mxu0 %v361
          %398 = vmatprep.subr.mxu0 0.0
          %399 = vmatpush1.msra.mxu0 %v362
          %400 = vmatprep.subr.mxu0 0.0
          %401 = vmatpush1.msra.mxu0 %v363
          %402 = vmatprep.subr.mxu0 0.0
          %403 = vmatpush1.msra.mxu0 %v364
          %404 = vmatprep.subr.mxu0 0.0
          %405 = vmatpush1.msra.mxu0 0.0
          %406 = vmatprep.subr.mxu0 0.0
          %407 = vmatpush1.msra.mxu0 0.0
          %408 = vmatprep.subr.mxu0 0.0
          %409 = vmatpush1.msra.mxu0 0.0
          %410 = vmatprep.subr.mxu0 0.0
          %411 = vmatpush1.msra.mxu0 0.0
          %412 = vmatprep.subr.mxu0 0.0
          %413 = vmatpush1.msra.mxu0 0.0
          %414 = vmatprep.subr.mxu0 0.0
          %415 = vmatpush1.msra.mxu0 0.0
          %416 = vmatprep.subr.mxu0 0.0
          %417 = vmatpush1.msra.mxu0 0.0
          %418 = vmatprep.subr.mxu0 0.0
          %419 = vmatpush1.msra.mxu0 0.0
          %420 = vmatprep.subr.mxu0 0.0
          %421 = vmatpush1.msra.mxu0 0.0
          %422 = vmatprep.subr.mxu0 0.0
          %423 = vmatpush1.msra.mxu0 0.0
          %424 = vmatprep.subr.mxu0 0.0
          %425 = vmatpush1.msra.mxu0 0.0
          %426 = vmatprep.subr.mxu0 0.0
          %427 = vmatpush1.msra.mxu0 0.0
          %428 = vmatprep.subr.mxu0 0.0
          %429 = vmatpush1.msra.mxu0 0.0
          %430 = vmatprep.subr.mxu0 0.0
          %431 = vmatpush1.msra.mxu0 0.0
          %432 = vmatprep.subr.mxu0 0.0
          %433 = vmatpush1.msra.mxu0 0.0
          %434 = vmatprep.subr.mxu0 0.0
          %435 = vmatpush1.msra.mxu0 0.0
          %436 = vmatprep.mubr.f32.mxu0 0.0
          %437 = vmatmul.mubr.f32.gmra.mrb[0].mxu0 %v347
          %v438 = vpop.f32.mrb[0].mxu0
          %v439 = vadd.f32 %v370, %v438
          %v440 = vpop.f32.mrb[0].mxu0
          %441 = vmatprep.mubr.f32.mxu0 0.0
          %442 = vmatmul.mubr.f32.gmra.mrb[0].mxu0 %v348
          %v443 = vpop.f32.mrb[0].mxu0
          %v444 = vadd.f32 %v370, %v443
          %v445 = vpop.f32.mrb[0].mxu0
          %446 = vdwg.mxu0
          %v447 = vmax.f32 %v439, 0.0
          %v448 = vmax.f32 %v444, 0.0
          %449 = vst [vmem:[#allocation2] sm:$0xff] %v447
          %450 = vst [vmem:[#allocation2 + $0x8] sm:$0xff] %v448
        $region64: #{tpu_custom_call.1} parent=47 // pred_fallthru
          _
        %s451 = smul.u32 %s28, 128
        %s452 = scalar_lea.vmem [#allocation8], %s451
        %v453 = vld [vmem:[%s452] sm:$0xff]
        %v454 = vld [vmem:[%s452 + $0x8] sm:$0xff]
        %v455 = vld [vmem:[%s452 + $0x10] sm:$0xff]
        %v456 = vld [vmem:[%s452 + $0x18] sm:$0xff]
        %v457 = vld [vmem:[%s452 + $0x20] sm:$0xff]
        %v458 = vld [vmem:[%s452 + $0x28] sm:$0xff]
        %v459 = vld [vmem:[%s452 + $0x30] sm:$0xff]
        %v460 = vld [vmem:[%s452 + $0x38] sm:$0xff]
        %v461 = vld [vmem:[%s452 + $0x40] sm:$0xff]
        %v462 = vld [vmem:[%s452 + $0x48] sm:$0xff]
        %v463 = vld [vmem:[%s452 + $0x50] sm:$0xff]
        %v464 = vld [vmem:[%s452 + $0x58] sm:$0xff]
        %v465 = vld [vmem:[%s452 + $0x60] sm:$0xff]
        %v466 = vld [vmem:[%s452 + $0x68] sm:$0xff]
        %v467 = vld [vmem:[%s452 + $0x70] sm:$0xff]
        %v468 = vld [vmem:[%s452 + $0x78] sm:$0xff]
        %v469 = vld [vmem:[#allocation2] sm:$0xff]
        %v470 = vld [vmem:[#allocation2 + $0x8] sm:$0xff]
        %s471 = scalar_lea.vmem %s4, %s28
        %v472 = vld [vmem:[%s471] sm:$0x1]
        %v474 = vlaneseq
        %v475 = vshrl.u32 %v474, 7
        %v476 = vsub.s32 0, %v475
        %v477 = vrot.slane %v472, %v476
        %479 = vmatprep.subr.mxu0 0.0
        %480 = vmatpush1.msra.mxu0 %v453
        %481 = vmatprep.subr.mxu0 0.0
        %482 = vmatpush1.msra.mxu0 %v454
        %483 = vmatprep.subr.mxu0 0.0
        %484 = vmatpush1.msra.mxu0 %v455
        %485 = vmatprep.subr.mxu0 0.0
        %486 = vmatpush1.msra.mxu0 %v456
        %487 = vmatprep.subr.mxu0 0.0
        %488 = vmatpush1.msra.mxu0 %v457
        %489 = vmatprep.subr.mxu0 0.0
        %490 = vmatpush1.msra.mxu0 %v458
        %491 = vmatprep.subr.mxu0 0.0
        %492 = vmatpush1.msra.mxu0 %v459
        %493 = vmatprep.subr.mxu0 0.0
        %494 = vmatpush1.msra.mxu0 %v460
        %495 = vmatprep.subr.mxu0 0.0
        %496 = vmatpush1.msra.mxu0 %v461
        %497 = vmatprep.subr.mxu0 0.0
        %498 = vmatpush1.msra.mxu0 %v462
        %499 = vmatprep.subr.mxu0 0.0
        %500 = vmatpush1.msra.mxu0 %v463
        %501 = vmatprep.subr.mxu0 0.0
        %502 = vmatpush1.msra.mxu0 %v464
        %503 = vmatprep.subr.mxu0 0.0
        %504 = vmatpush1.msra.mxu0 %v465
        %505 = vmatprep.subr.mxu0 0.0
        %506 = vmatpush1.msra.mxu0 %v466
        %507 = vmatprep.subr.mxu0 0.0
        %508 = vmatpush1.msra.mxu0 %v467
        %509 = vmatprep.subr.mxu0 0.0
        %510 = vmatpush1.msra.mxu0 %v468
        %511 = vmatprep.subr.mxu0 0.0
        %512 = vmatpush1.msra.mxu0 0.0
        %513 = vmatprep.subr.mxu0 0.0
        %514 = vmatpush1.msra.mxu0 0.0
        %515 = vmatprep.subr.mxu0 0.0
        %516 = vmatpush1.msra.mxu0 0.0
        %517 = vmatprep.subr.mxu0 0.0
        %518 = vmatpush1.msra.mxu0 0.0
        %519 = vmatprep.subr.mxu0 0.0
        %520 = vmatpush1.msra.mxu0 0.0
        %521 = vmatprep.subr.mxu0 0.0
        %522 = vmatpush1.msra.mxu0 0.0
        %523 = vmatprep.subr.mxu0 0.0
        %524 = vmatpush1.msra.mxu0 0.0
        %525 = vmatprep.subr.mxu0 0.0
        %526 = vmatpush1.msra.mxu0 0.0
        %527 = vmatprep.subr.mxu0 0.0
        %528 = vmatpush1.msra.mxu0 0.0
        %529 = vmatprep.subr.mxu0 0.0
        %530 = vmatpush1.msra.mxu0 0.0
        %531 = vmatprep.subr.mxu0 0.0
        %532 = vmatpush1.msra.mxu0 0.0
        %533 = vmatprep.subr.mxu0 0.0
        %534 = vmatpush1.msra.mxu0 0.0
        %535 = vmatprep.subr.mxu0 0.0
        %536 = vmatpush1.msra.mxu0 0.0
        %537 = vmatprep.subr.mxu0 0.0
        %538 = vmatpush1.msra.mxu0 0.0
        %539 = vmatprep.subr.mxu0 0.0
        %540 = vmatpush1.msra.mxu0 0.0
        %541 = vmatprep.subr.mxu0 0.0
        %542 = vmatpush1.msra.mxu0 0.0
        %543 = vmatprep.mubr.f32.mxu0 0.0
        %544 = vmatmul.mubr.f32.gmra.mrb[0].mxu0 %v469
        %v545 = vpop.f32.mrb[0].mxu0
        %v546 = vadd.f32 %v477, %v545
        %v547 = vpop.f32.mrb[0].mxu0
        %548 = vmatprep.mubr.f32.mxu0 0.0
        %549 = vmatmul.mubr.f32.gmra.mrb[0].mxu0 %v470
        %v550 = vpop.f32.mrb[0].mxu0
        %v551 = vadd.f32 %v477, %v550
        %v552 = vpop.f32.mrb[0].mxu0
        %553 = vdwg.mxu0
        %v554 = vmax.f32 %v546, 0.0
        %v555 = vmax.f32 %v551, 0.0
        %556 = vst [vmem:[#allocation2] sm:$0xff] %v554
        %557 = vst [vmem:[#allocation2 + $0x8] sm:$0xff] %v555
        %p558 = scmp.eq.s32.totalorder %s28, 2
        // Predicated region
        $region65: #{tpu_custom_call.1} parent=47 // pred_check
          %p559 = pneg %p558
        $region66: #{tpu_custom_call.1} parent=47 // pred_check_branch
          %561 = sbr.rel (%p559) target = $region68
        $region67: #{tpu_custom_call.1} parent=47 // pred_region
          %v562 = vld [vmem:[#allocation2] sm:$0xff]
          %v563 = vld [vmem:[#allocation2 + $0x8] sm:$0xff]
          %v564 = vld [vmem:[%s5] sm:$0x1]
          %v566 = vlaneseq
          %v567 = vshrl.u32 %v566, 7
          %v568 = vsub.s32 0, %v567
          %v569 = vrot.slane %v564, %v568
          %v571 = vmul.f32 %v562, %v569
          %v572 = vmul.f32 %v563, %v569
          %573 = vadd.xlane.f32.xlu0 %v571
          %v574 = vpop.xlane.xlu0 %573
          %575 = vadd.xlane.f32.xlu0 %v572
          %v576 = vpop.xlane.xlu0 %575
          %s577 = sld [smem:[#allocation3]]
          %v578 = vstv %s577
          %v579 = vadd.f32 %v574, %v578
          %v580 = vadd.f32 %v576, %v578
          %vm581 = vcmask 7168
          %582 = vst.msk [vmem:[%s341] sm:$0xff] %vm581, %v579
          %583 = vst.msk [vmem:[%s341 + $0x8] sm:$0xff] %vm581, %v580
        $region68: #{tpu_custom_call.1} parent=47 // pred_fallthru
          _
        %s584 = smul.u32 2, %s27
        %p585 = scmp.lt.s32.totalorder %s584, 3
        %s586 = scalar_select %p585, %s584, 3
        %s587 = smul.addr %s586, 8
        %s588 = scalar_lea.vmem %s7, %s587
        // Predicated region
        $region69: #{tpu_custom_call.1} parent=47 // pred_check
          %p589 = pneg %p205
        $region70: #{tpu_custom_call.1} parent=47 // pred_check_branch
          %591 = sbr.rel (%p589) target = $region72
        $region71: #{tpu_custom_call.1} parent=47 // pred_region
          %s592 = smul.u32 2, %s27
        $region72: #{tpu_custom_call.1} parent=47 // pred_fallthru
          _
      $region48: #{tpu_custom_call.1} parent=5 // pred_fallthru
        _
      %p593 = scmp.le.s32.totalorder 2, %s18
      // Predicated region
      $region73: #{tpu_custom_call.1} parent=5 // pred_check
        %p594 = pneg %p593
      $region74: #{tpu_custom_call.1} parent=5 // pred_check_branch
        %596 = sbr.rel (%p594) target = $region76
      $region75: #{tpu_custom_call.1} parent=5 // pred_region
        %s597 = ssub.s32 %s18, 2
        // Predicated region
        $region77: #{tpu_custom_call.1} parent=75 // pred_check
          %p598 = pneg %p211
        $region78: #{tpu_custom_call.1} parent=75 // pred_check_branch
          %600 = sbr.rel (%p598) target = $region80
        $region79: #{tpu_custom_call.1} parent=75 // pred_region
          %s601 = smul.u32 2, %s29
          %p602 = scmp.lt.s32.totalorder %s601, 3
          %s603 = scalar_select %p602, %s601, 3
          %s604 = smul.addr %s603, 8
          %s605 = scalar_lea.vmem %s7, %s604
        $region80: #{tpu_custom_call.1} parent=75 // pred_fallthru
          _
      $region76: #{tpu_custom_call.1} parent=5 // pred_fallthru
        _
    $region6: #{tpu_custom_call.1} parent=1 // loop_footer
      %s22 = sadd.s32 1, %s18
    $region7: #{tpu_custom_call.1} parent=1 // loop_footer_branch
      %17 = sbr.rel target = $region3
    $region8: #{tpu_custom_call.1} parent=1 // loop_exit
      _
    %606 = vsyncpa [#allocation5], 1
    %s607 = scalar_lea.sflag [#allocation5], 1
    %608 = vsyncpa %s607, 1
    %609 = vsyncpa [#allocation7], 1

</llo_original>
